<compile_context>
chip_gen: v5e
topology: v5e:2x2
jax: 0.10.0
libtpu: 0.0.40
codegen_flags: <defaults>
</compile_context>

<pallas_src>
import functools

import jax
import jax.numpy as jnp
from jax.experimental import pallas as pl
from jax.experimental.pallas import tpu as pltpu


_LANE = 128
_TARGET_TILE_BYTES = 2 << 20      # ~2 MiB of native-dtype input per batch tile
_MAX_TILE_ROWS = 2048
_MAX_SINGLE_TILE_C = 8192         # above this, tile the class axis
_DEFAULT_CLASS_TILE = 2048


# --------------------------------------------------------------------------- #
# Kernels
# --------------------------------------------------------------------------- #
def _nh_row_kernel(x_ref, o_ref, *, native_max: bool):
    """One (tb, C) batch tile, full class axis: write per-row sum_c p*log_p."""
    x_nat = x_ref[...]
    if native_max:                 # bf16 row max is exact; skips one f32 pass
        m = jnp.max(x_nat, axis=1, keepdims=True).astype(jnp.float32)
        x = x_nat.astype(jnp.float32)
    else:
        x = x_nat.astype(jnp.float32)
        m = jnp.max(x, axis=1, keepdims=True)
    shifted = x - m
    e = jnp.exp(shifted)                                # only full-tile transcendental
    s = jnp.sum(e, axis=1, keepdims=True)               # (tb, 1)
    t = jnp.sum(e * shifted, axis=1, keepdims=True)     # (tb, 1)
    o_ref[...] = t / s - jnp.log(s)                     # == sum_c p*log_p


def _nh_row_kernel_ctiled(x_ref, o_ref, m_ref, s_ref, t_ref, *, native_max: bool):
    """(tb, tc) tile of an online-softmax sweep over class chunks.

    Running per-row state (VMEM scratch, re-initialized at the first class
    chunk of every batch tile):
      m = running max, s = sum_c exp(x - m), t = sum_c exp(x - m) * (x - m).
    """
    j = pl.program_id(1)

    x_nat = x_ref[...]
    if native_max:
        mc = jnp.max(x_nat, axis=1, keepdims=True).astype(jnp.float32)
        x = x_nat.astype(jnp.float32)
    else:
        x = x_nat.astype(jnp.float32)
        mc = jnp.max(x, axis=1, keepdims=True)

    @pl.when(j == 0)
    def _():
        shifted = x - mc
        e = jnp.exp(shifted)
        m_ref[...] = mc
        s_ref[...] = jnp.sum(e, axis=1, keepdims=True)
        t_ref[...] = jnp.sum(e * shifted, axis=1, keepdims=True)

    @pl.when(j > 0)
    def _():
        m_old = m_ref[...]
        m_new = jnp.maximum(m_old, mc)
        alpha = jnp.exp(m_old - m_new)                  # in (0, 1]
        shifted = x - m_new
        e = jnp.exp(shifted)
        s_scaled = alpha * s_ref[...]
        # Old sum of e*(x - m_old), re-expressed against m_new:
        #   alpha * t_old + (m_old - m_new) * alpha * s_old
        t_ref[...] = (alpha * t_ref[...] + (m_old - m_new) * s_scaled
                      + jnp.sum(e * shifted, axis=1, keepdims=True))
        s_ref[...] = s_scaled + jnp.sum(e, axis=1, keepdims=True)
        m_ref[...] = m_new

    @pl.when(j == pl.num_programs(1) - 1)
    def _():
        s = s_ref[...]
        o_ref[...] = t_ref[...] / s - jnp.log(s)


# --------------------------------------------------------------------------- #
# Wrapper helpers
# --------------------------------------------------------------------------- #
def _round_up(x: int, m: int) -> int:
    return (x + m - 1) // m * m


def _sublane_multiple(itemsize: int) -> int:
    return {4: 8, 2: 16, 1: 32}.get(itemsize, 8)


def _vmem_limit_bytes() -> int:
    try:
        cap = int(pltpu.get_tpu_info().vmem_capacity_bytes)   # 128 MiB v5e/v6e, 64 MiB v7x
    except Exception:
        cap = 64 << 20
    return min(48 << 20, cap // 2)    # 48 MiB on 128-MiB chips, 32 MiB on v7x


def _use_native_max(dtype) -> bool:
    """bf16 row max on chips with bf16 VALUs (v6e/v7x); f32-first on v5e and
    older. Purely a perf switch — the max is exact either way."""
    if dtype != jnp.bfloat16:
        return False
    try:
        kind = jax.devices()[0].device_kind.lower()
    except Exception:
        return True
    return not any(old in kind for old in ("v2", "v3", "v4", "v5"))


def _pick_tile_rows(row_bytes: int, itemsize: int, batch: int) -> int:
    sub = _sublane_multiple(itemsize)
    tb = _TARGET_TILE_BYTES // max(row_bytes, 1)
    tb = max(sub, min(tb, _MAX_TILE_ROWS) // sub * sub)
    return min(tb, _round_up(batch, sub))


def _input_spec(block_shape, index_map, pipelined_steps: int) -> pl.BlockSpec:
    """Input BlockSpec; 3-deep buffering when the pipeline is long enough to
    hide the ~0.35 us/step overhead (tiles are only ~2 MiB so it is cheap)."""
    if pipelined_steps >= 3:
        try:
            return pl.BlockSpec(block_shape, index_map,
                                pipeline_mode=pl.Buffered(3))
        except Exception:          # older jax without pipeline_mode / Buffered
            pass
    return pl.BlockSpec(block_shape, index_map)


def _cost_estimate(batch: int, n_classes: int, itemsize: int, out_rows: int):
    try:
        return pl.CostEstimate(
            flops=6 * batch * n_classes,
            transcendentals=batch * n_classes,
            bytes_accessed=batch * n_classes * itemsize + out_rows * 4)
    except Exception:
        return None


def nh_loss_ref(x: jax.Array) -> jax.Array:
    """Pure-JAX reference (matches the PyTorch NHLoss forward)."""
    xf = x.astype(jnp.float32)
    p = jax.nn.softmax(xf, axis=1)
    logp = jax.nn.log_softmax(xf, axis=1)
    return jnp.mean(jnp.sum(p * logp, axis=1))


# --------------------------------------------------------------------------- #
# Public entry point
# --------------------------------------------------------------------------- #
def nh_loss(x: jax.Array, *, tb: int | None = None, tc: int | None = None,
            allow_xla_fallback: bool = True) -> jax.Array:
    """NHLoss forward: mean_b sum_c softmax(x,1)*log_softmax(x,1). x: [B, C]."""
    B, C = x.shape
    itemsize = x.dtype.itemsize

    # Tiny class counts leave >=3/4 of every vreg lane idle; plain XLA wins.
    # TODO(synk): lane-pack k = 128 // C rows per vreg instead of falling back.
    if allow_xla_fallback and C < _LANE and tb is None and tc is None:
        return nh_loss_ref(x)

    native_max = _use_native_max(x.dtype)
    sub = _sublane_multiple(itemsize)
    vmem_limit = _vmem_limit_bytes()

    # Decide whether the class axis needs tiling (online softmax).
    if tc is None and C > _MAX_SINGLE_TILE_C:
        tc = _DEFAULT_CLASS_TILE
    if tc is not None:
        tc = max(_LANE, _round_up(min(tc, C), _LANE))
        if _round_up(C, tc) == tc:       # a single class chunk: plain path
            tc = None

    if tb is None:
        row_bytes = (C if tc is None else tc) * itemsize
        tb = _pick_tile_rows(row_bytes, itemsize, B)
    tb = max(sub, (tb // sub) * sub)
    tb = min(tb, _round_up(B, sub))
    padded_B = _round_up(B, tb)

    cost = _cost_estimate(B, C, itemsize, padded_B)
    out_shape = jax.ShapeDtypeStruct((padded_B, 1), jnp.float32)

    if tc is None:
        # ---- single class tile per batch tile, fully "parallel" grid ------ #
        if padded_B != B:
            x = jnp.pad(x, ((0, padded_B - B), (0, 0)))
        grid = (padded_B // tb,)
        per_row = pl.pallas_call(
            functools.partial(_nh_row_kernel, native_max=native_max),
            out_shape=out_shape,
            grid_spec=pltpu.PrefetchScalarGridSpec(
                num_scalar_prefetch=0,
                grid=grid,
                in_specs=[_input_spec((tb, C), lambda i: (i, 0), grid[0])],
                out_specs=pl.BlockSpec((tb, 1), lambda i: (i, 0)),
            ),
            compiler_params=pltpu.CompilerParams(
                dimension_semantics=("parallel",),
                vmem_limit_bytes=vmem_limit),
            cost_estimate=cost,
        )(x)
    else:
        # ---- online softmax over class chunks ("parallel", "arbitrary") --- #
        padded_C = _round_up(C, tc)
        if padded_C != C:
            # Pad classes with a huge *finite* negative: exp underflows to
            # exactly 0 and 0 * finite == 0, so padded classes contribute
            # nothing (no NaN, unlike -inf padding).
            pad_val = float(jnp.finfo(x.dtype).min) / 2
            x = jnp.pad(x, ((0, 0), (0, padded_C - C)), constant_values=pad_val)
        if padded_B != B:
            x = jnp.pad(x, ((0, padded_B - B), (0, 0)))
        grid = (padded_B // tb, padded_C // tc)
        per_row = pl.pallas_call(
            functools.partial(_nh_row_kernel_ctiled, native_max=native_max),
            out_shape=out_shape,
            grid_spec=pltpu.PrefetchScalarGridSpec(
                num_scalar_prefetch=0,
                grid=grid,
                in_specs=[_input_spec((tb, tc), lambda i, j: (i, j),
                                      grid[0] * grid[1])],
                out_specs=pl.BlockSpec((tb, 1), lambda i, j: (i, 0)),
                scratch_shapes=[pltpu.VMEM((tb, 1), jnp.float32)] * 3,
            ),
            compiler_params=pltpu.CompilerParams(
                dimension_semantics=("parallel", "arbitrary"),
                vmem_limit_bytes=vmem_limit),
            cost_estimate=cost,
        )(x)

    # Tiny final reduction + exact mean over the real rows, done in XLA.
    return jnp.sum(per_row[:B, 0]) / jnp.float32(B)


# --------------------------------------------------------------------------- #
# Demo / self-test
# --------------------------------------------------------------------------- #
if __name__ == "__main__":
    key = jax.random.PRNGKey(0)
    k1, k2, k3, k4 = jax.random.split(key, 4)

    def check(got, want, tol=1e-5):
        got = jax.block_until_ready(got)
        want = jax.block_until_ready(want)
        assert jnp.allclose(got, want, atol=tol, rtol=tol), (got, want)

    # 1) Lane-dense single-tile path (f32).
    x1 = jax.random.normal(k1, (16, 128), dtype=jnp.float32)
    check(nh_loss(x1), nh_loss_ref(x1))

    # 2) Multi-tile batch with padding: per-tile partial rows, "parallel" axis.
    x2 = 3.0 * jax.random.normal(k2, (20, 128), dtype=jnp.float32)
    check(nh_loss(x2, tb=8), nh_loss_ref(x2))

    # 3) Native bf16 ingestion (bf16 row max on v6e/v7x, f32-first elsewhere).
    x3 = x1.astype(jnp.bfloat16)
    check(nh_loss(x3), nh_loss_ref(x3), tol=1e-4)

    # 4) Class-tiled online-softmax path (C not a multiple of the class tile).
    x4 = 2.0 * jax.random.normal(k3, (20, 200), dtype=jnp.float32)
    check(nh_loss(x4, tb=8, tc=128), nh_loss_ref(x4))

    # 5) Tiny C: XLA fallback by default, and the Pallas path forced once too.
    x5 = jax.random.normal(k4, (16, 32), dtype=jnp.float32)
    check(nh_loss(x5), nh_loss_ref(x5))
    check(nh_loss(x5, allow_xla_fallback=False), nh_loss_ref(x5))

    print("KERNEL_OK")
</pallas_src>

<mosaic_0001>
module attributes {stable_mosaic.version = 11 : i64} {
  func.func @_nh_row_kernel(%arg0: i32, %arg1: memref<16x128xf32, #tpu.memory_space<vmem>>, %arg2: memref<16x1xf32, #tpu.memory_space<vmem>>) attributes {dimension_semantics = [#tpu.dimension_semantics<parallel>], iteration_bounds = array<i64: 1>, scalar_prefetch = 0 : i64, scratch_operands = 0 : i64, tpu.core_type = #tpu.core_type<tc>, window_params = [{transform_indices = @transform_0, window_bounds = array<i64: 16, 128>}, {transform_indices = @transform_1, window_bounds = array<i64: 16, 1>}]} {
    %c0 = arith.constant 0 : index
    %c0_0 = arith.constant 0 : index
    %0 = vector.load %arg1[%c0, %c0_0] : memref<16x128xf32, #tpu.memory_space<vmem>>, vector<16x128xf32>
    %cst = arith.constant dense<0xFF800000> : vector<16xf32>
    %1 = vector.multi_reduction <maximumf>, %0, %cst [1] : vector<16x128xf32> to vector<16xf32>
    %2 = vector.shape_cast %1 : vector<16xf32> to vector<16x1xf32>
    %3 = vector.broadcast %2 : vector<16x1xf32> to vector<16x128xf32>
    %4 = arith.subf %0, %3 : vector<16x128xf32>
    %5 = math.exp %4 : vector<16x128xf32>
    %cst_1 = arith.constant dense<0.000000e+00> : vector<16xf32>
    %6 = vector.multi_reduction <add>, %5, %cst_1 [1] : vector<16x128xf32> to vector<16xf32>
    %7 = vector.shape_cast %6 : vector<16xf32> to vector<16x1xf32>
    %8 = arith.mulf %5, %4 : vector<16x128xf32>
    %cst_2 = arith.constant dense<0.000000e+00> : vector<16xf32>
    %9 = vector.multi_reduction <add>, %8, %cst_2 [1] : vector<16x128xf32> to vector<16xf32>
    %10 = vector.shape_cast %9 : vector<16xf32> to vector<16x1xf32>
    %11 = arith.divf %10, %7 : vector<16x1xf32>
    %12 = math.log %7 : vector<16x1xf32>
    %13 = arith.subf %11, %12 : vector<16x1xf32>
    %c0_3 = arith.constant 0 : index
    %c0_4 = arith.constant 0 : index
    %14 = vector.load %arg2[%c0_3, %c0_4] : memref<16x1xf32, #tpu.memory_space<vmem>>, vector<16x1xf32>
    tpu.vector_store %arg2[%c0_3, %c0_4], %13 {strides = array<i32>} : memref<16x1xf32, #tpu.memory_space<vmem>>, vector<16x1xf32>,
    return
  }
  func.func @transform_0(%arg0: i32) -> (i32, i32) {
    %c0_i32 = arith.constant 0 : i32
    %c0_i32_0 = arith.constant 0 : i32
    return %arg0, %c0_i32 : i32, i32
  }
  func.func @transform_1(%arg0: i32) -> (i32, i32) {
    %c0_i32 = arith.constant 0 : i32
    %c0_i32_0 = arith.constant 0 : i32
    return %arg0, %c0_i32 : i32, i32
  }
}

</mosaic_0001>

<llo_original>
// kernel: tpu_custom_call.1
$region0: #{tpu_custom_call.1}
  #allocation0 [shape = 'u32[]', space=smem, size = 0x4, offset = 0x4, fixed_abs, tag = 'smem constant byte address 0x4 - core index']
  #allocation1 [shape = 'u32[72,128]{1,0:T(1,128)}', space=vmem, size = 0x9000, scoped, tag = 'internal scratch']
  %s0 = inlined_call_operand.hbm [shape: f32[16,128], index: 0, kind: input, shape index: {}]
  %s1 = inlined_call_operand.vmem [shape: f32[16,1], index: 1, kind: output, shape index: {}]
  %s2 = sld [smem:[#allocation0]]
  $region18: #{tpu_custom_call.1} parent=0
    _
  %s4 = ssub.s32 1, %s2
  %s5 = scalar_select 0, %s4, %s2
  $region1: #{tpu_custom_call.1} parent=0
    #allocation2 [shape = 'u8[8192]{0}', space=vmem, size = 0x2000, scoped, tag = 'input window, operand 0, single buffered']
    #allocation3 [shape = 's32[1]{0}', space=sflag, size = 0x4, scoped, tag = 'scoped memory for tpu_custom_call.1']
    %6 = vsyncpa [#allocation3], 0
    // Predicated region
    $region2: #{tpu_custom_call.1} parent=1 // pred_check
      _
    $region3: #{tpu_custom_call.1} parent=1 // pred_check_branch
      %8 = sbr.rel (0) target = $region5
    $region4: #{tpu_custom_call.1} parent=1 // pred_region
      %10 = vsyncadd [#allocation3], 0
      %s11 = sshll.u32 %s0, 4
      %s12 = int_to_ptr.hbm [resolvable:$true] %s11
      %s13 = sshll.u32 [#allocation2], 4
      %s14 = int_to_ptr.vmem [resolvable:$true] %s13
      %19 = dma.hbm_to_vmem [thread:$0]  %s12, 256, %s14, [#allocation3], 128, 128, 8
    $region5: #{tpu_custom_call.1} parent=1 // pred_fallthru
      _
    // Predicated region
    $region6: #{tpu_custom_call.1} parent=1 // pred_check
      _
    $region7: #{tpu_custom_call.1} parent=1 // pred_check_branch
      %21 = sbr.rel (0) target = $region9
    $region8: #{tpu_custom_call.1} parent=1 // pred_region
      %23 = dma.done [#allocation3], 256
    $region9: #{tpu_custom_call.1} parent=1 // pred_fallthru
      _
    %v24 = vld [vmem:[#allocation2] sm:$0xff]
    %v25 = vld [vmem:[#allocation2 + $0x8] sm:$0xff]
    %26 = vmax.xlane.f32.xlu0 %v24
    %v27 = vpop.xlane.xlu0 %26
    %28 = vmax.xlane.f32.xlu0 %v25
    %v29 = vpop.xlane.xlu0 %28
    %v30 = vsub.f32 %v24, %v27
    %v31 = vsub.f32 %v25, %v29
    %v32 = vmul.f32 %v30, 1.442695
    %v33 = vpow.pop %v32
    %v34 = vmul.f32 %v31, 1.442695
    %v35 = vpow.pop %v34
    %36 = vadd.xlane.f32.xlu0 %v33
    %v37 = vpop.xlane.xlu0 %36
    %38 = vadd.xlane.f32.xlu0 %v35
    %v39 = vpop.xlane.xlu0 %38
    %v40 = vmul.f32 %v33, %v30
    %v41 = vmul.f32 %v35, %v31
    %42 = vadd.xlane.f32.xlu0 %v40
    %v43 = vpop.xlane.xlu0 %42
    %44 = vadd.xlane.f32.xlu0 %v41
    %v45 = vpop.xlane.xlu0 %44
    %v46 = vrcp.pop %v37
    %v47 = vmul.f32 %v37, %v46
    %v48 = vsub.f32 1.0, %v47
    %v49 = vmul.f32 %v46, %v48
    %v50 = vadd.f32 %v46, %v49
    %vm51 = vweird.f32 %v37
    %vm52 = vweird.f32 %v46
    %vm53 = vmor %vm51, %vm52
    %v54 = vsel %vm53, %v46, %v50
    %v55 = vand.u32 2147483647, %v37
    %vm56 = vcmp.eq.f32.partialorder %v55, 8.507059e+37
    %v57 = vand.u32 %v37, 2147483648
    %v58 = vor.u32 1.1754944e-38, %v57
    %v59 = vsel %vm56, %v58, %v54
    %v60 = vmul.f32 %v43, %v59
    %v61 = vrcp.pop %v39
    %v62 = vmul.f32 %v39, %v61
    %v63 = vsub.f32 1.0, %v62
    %v64 = vmul.f32 %v61, %v63
    %v65 = vadd.f32 %v61, %v64
    %vm66 = vweird.f32 %v39
    %vm67 = vweird.f32 %v61
    %vm68 = vmor %vm66, %vm67
    %v69 = vsel %vm68, %v61, %v65
    %v70 = vand.u32 2147483647, %v39
    %vm71 = vcmp.eq.f32.partialorder %v70, 8.507059e+37
    %v72 = vand.u32 %v39, 2147483648
    %v73 = vor.u32 1.1754944e-38, %v72
    %v74 = vsel %vm71, %v73, %v69
    %v75 = vmul.f32 %v45, %v74
    %v76 = vlog2.pop %v37
    %v77 = vmul.f32 %v76, 0.6931472
    %v78 = vlog2.pop %v39
    %v79 = vmul.f32 %v78, 0.6931472
    %v80 = vsub.f32 %v60, %v77
    %v81 = vsub.f32 %v75, %v79
    %vm82 = vcmask 7168
    %83 = vst.msk [vmem:[%s1] sm:$0xff] %vm82, %v80
    %84 = vst.msk [vmem:[%s1 + $0x8] sm:$0xff] %vm82, %v81
    // Predicated region
    $region10: #{tpu_custom_call.1} parent=1 // pred_check
      _
    $region11: #{tpu_custom_call.1} parent=1 // pred_check_branch
      %86 = sbr.rel (0) target = $region13
    $region12: #{tpu_custom_call.1} parent=1 // pred_region
      _
    $region13: #{tpu_custom_call.1} parent=1 // pred_fallthru
      _
    // Predicated region
    $region14: #{tpu_custom_call.1} parent=1 // pred_check
      _
    $region15: #{tpu_custom_call.1} parent=1 // pred_check_branch
      %88 = sbr.rel (0) target = $region17
    $region16: #{tpu_custom_call.1} parent=1 // pred_region
      _
    $region17: #{tpu_custom_call.1} parent=1 // pred_fallthru
      _
    %89 = vsyncpa [#allocation3], 1

</llo_original>
